<compile_context>
chip_gen: v7x
topology: tpu7x:2x2x1
jax: 0.10.0
libtpu: 0.0.40
codegen_flags: <defaults>
</compile_context>

<pallas_src>
import math

import jax
import jax.numpy as jnp
from jax import lax
from jax.experimental import pallas as pl
from jax.experimental.pallas import tpu as pltpu


# --------------------------------------------------------------------------- hw sizing
_VMEM_BUDGET_CACHE = None


def _vmem_budget_bytes():
    """~75% of physical VMEM, capped at 100 MiB (v5e/v6e -> 96 MiB, v7x -> 48 MiB)."""
    global _VMEM_BUDGET_CACHE
    if _VMEM_BUDGET_CACHE is None:
        cap = 64 * 1024 * 1024
        try:
            info = pltpu.get_tpu_info()
            cap = int(getattr(info, "vmem_capacity_bytes", cap) or cap)
        except Exception:
            pass
        _VMEM_BUDGET_CACHE = min(cap * 3 // 4, 100 * 1024 * 1024)
    return _VMEM_BUDGET_CACHE


# --------------------------------------------------------------------------- helpers
def _round_up(x, m):
    return (x + m - 1) // m * m


def _pick_tile(dim, pref, align):
    """Largest tile <= pref that divides dim (dim is already a multiple of align)."""
    pref = max(align, min(pref, dim))
    if dim <= pref:
        return dim
    if dim % pref == 0:
        return pref
    t = (pref // align) * align
    while t >= align:
        if dim % t == 0:
            return t
        t -= align
    return dim


def _choose_matmul_tiles(M, K, N, x_bytes, o_bytes, budget):
    """Single-K-step matmul tiles.  Prefer a row block covering all of M so the (K, N)
    weight is streamed from HBM exactly once; pick the largest lane-dense tn that still
    fits the VMEM budget with double-buffering."""
    for tn_pref in (N, 2048, 1024, 512, 256, 128):
        tn = _pick_tile(N, tn_pref, 128)
        fixed = 2 * (K * tn * 2 + tn * 4)            # W (bf16) + bias (f32), x2 buffers
        per_row = 2 * (K * x_bytes + tn * o_bytes)   # x tile + out tile, x2 buffers
        tm_cap = max(0, budget - fixed) // per_row
        if tm_cap >= M:
            return M, tn
    tn = _pick_tile(N, 512, 128)
    fixed = 2 * (K * tn * 2 + tn * 4)
    per_row = 2 * (K * x_bytes + tn * o_bytes)
    tm_cap = max(8, max(0, budget - fixed) // per_row)
    tm = _pick_tile(M, (tm_cap // 8) * 8, 8)
    return tm, tn


def _choose_time_tile(T, Bp, Ep, budget):
    """Time-chunk size for the recurrent kernel derived from the VMEM budget."""
    fixed = 8 * Ep * Ep + 40 * Bp * Ep         # resident W_hh (bf16) + h/c state & blocks
    per_t = 20 * Bp * Ep                       # gx (bf16) + hseq (bf16), double-buffered
    tt = max(0, budget - fixed) // per_t
    return int(max(1, min(T, 64, tt)))


# --------------------------------------------------------------------------- kernels
def _matmul_bias_kernel(x_ref, w_ref, b_ref, o_ref):
    # Single-K-step fast path: K fits one tile -> no accumulator scratch, no
    # zero/accumulate/copy passes.  bf16 inputs, f32 MXU accumulation.
    o_ref[...] = (jnp.dot(x_ref[...], w_ref[...],
                          preferred_element_type=jnp.float32)
                  + b_ref[...]).astype(o_ref.dtype)


def _matmul_bias_acc_kernel(x_ref, w_ref, b_ref, o_ref, acc_ref):
    # General K-split path (unused for this model's sizes; kept for very large K).
    k = pl.program_id(2)

    @pl.when(k == 0)
    def _():
        acc_ref[...] = jnp.zeros_like(acc_ref)

    acc_ref[...] += jnp.dot(x_ref[...], w_ref[...],
                            preferred_element_type=jnp.float32)

    @pl.when(k == pl.num_programs(2) - 1)
    def _():
        o_ref[...] = (acc_ref[...] + b_ref[...]).astype(o_ref.dtype)


# --------------------------------------------------------------------------- wrappers
_MAX_SINGLE_K = 4096   # K tiles above this fall back to the accumulating kernel


def matmul_bias(x, w, b, out_dtype=jnp.float32):
    """out = x @ w + b.  x:(M,K) bf16, w:(K,N) bf16, b:(1,N) f32.
    Requires M%8==0, K%128==0, N%128==0 (caller pads)."""
    M, K = x.shape
    K2, N = w.shape
    assert K == K2 and b.shape == (1, N)
    assert M % 8 == 0 and K % 128 == 0 and N % 128 == 0
    budget = _vmem_budget_bytes()
    x_bytes = x.dtype.itemsize
    o_bytes = jnp.dtype(out_dtype).itemsize
    cost = pl.CostEstimate(
        flops=2 * M * N * K, transcendentals=0,
        bytes_accessed=x_bytes * M * K + 2 * K * N + 4 * N + o_bytes * M * N)

    if K <= _MAX_SINGLE_K:
        tm, tn = _choose_matmul_tiles(M, K, N, x_bytes, o_bytes, budget)
        return pl.pallas_call(
            _matmul_bias_kernel,
            out_shape=jax.ShapeDtypeStruct((M, N), out_dtype),
            grid_spec=pltpu.PrefetchScalarGridSpec(
                num_scalar_prefetch=0,
                grid=(M // tm, N // tn),
                in_specs=[
                    pl.BlockSpec((tm, K), lambda i, j: (i, 0)),
                    pl.BlockSpec((K, tn), lambda i, j: (0, j)),
                    pl.BlockSpec((1, tn), lambda i, j: (0, j)),
                ],
                out_specs=pl.BlockSpec((tm, tn), lambda i, j: (i, j)),
            ),
            compiler_params=pltpu.CompilerParams(
                dimension_semantics=("parallel", "parallel"),
                vmem_limit_bytes=budget),
            cost_estimate=cost,
        )(x, w, b)

    # Fallback: K split over an "arbitrary" grid axis with an f32 VMEM accumulator.
    tm = _pick_tile(M, 256, 8)
    tn = _pick_tile(N, 512, 128)
    tk = _pick_tile(K, 2048, 128)
    return pl.pallas_call(
        _matmul_bias_acc_kernel,
        out_shape=jax.ShapeDtypeStruct((M, N), out_dtype),
        grid_spec=pltpu.PrefetchScalarGridSpec(
            num_scalar_prefetch=0,
            grid=(M // tm, N // tn, K // tk),
            in_specs=[
                pl.BlockSpec((tm, tk), lambda i, j, k: (i, k)),
                pl.BlockSpec((tk, tn), lambda i, j, k: (k, j)),
                pl.BlockSpec((1, tn), lambda i, j, k: (0, j)),
            ],
            out_specs=pl.BlockSpec((tm, tn), lambda i, j, k: (i, j)),
            scratch_shapes=[pltpu.VMEM((tm, tn), jnp.float32)],
        ),
        compiler_params=pltpu.CompilerParams(
            dimension_semantics=("parallel", "parallel", "arbitrary"),
            vmem_limit_bytes=budget),
        cost_estimate=cost,
    )(x, w, b)


def lstm_recurrent(gx_tm, whh_t, h0, c0, *, T_real, time_tile):
    """Recurrent half of one LSTM layer, streamed over time chunks.

    gx_tm : (Tp, Bp, 4Ep) bf16  precomputed x@W_ih^T + (b_ih+b_hh), gate order i,f,g,o
    whh_t : (Ep, 4Ep)     bf16  W_hh^T, DMA'd ONCE into a single-buffered VMEM scratch
    h0/c0 : (Bp, Ep)      f32   initial state
    Returns hseq (Tp, Bp, Ep) bf16 and the final (hT, cT) (Bp, Ep) f32 taken at step
    T_real-1 (padded time steps are masked so they do not advance the state).
    """
    Tp, Bp, G = gx_tm.shape
    Ep = G // 4
    Tt = time_tile
    assert Tp % Tt == 0
    padded_time = Tp != T_real
    budget = _vmem_budget_bytes()

    def kernel(gx_ref, whh_hbm, h0_ref, c0_ref, hseq_ref, hT_ref, cT_ref,
               whh_vmem, h_scr, c_scr):
        @pl.when(pl.program_id(0) == 0)
        def _():
            # Loop-invariant W_hh: one DMA into a single (not double) VMEM buffer
            # that stays resident across all time chunks.
            pltpu.sync_copy(whh_hbm, whh_vmem)
            h_scr[...] = h0_ref[...]
            c_scr[...] = c0_ref[...]

        whh = whh_vmem[...]                     # hoisted loop-invariant load (bf16)
        t0 = pl.program_id(0) * Tt

        def step(t, carry):
            h = h_scr[...]
            c = c_scr[...]
            # bf16 x bf16 -> f32 MXU accumulation on the serial critical path.
            gates = gx_ref[t].astype(jnp.float32) + jnp.dot(
                h.astype(jnp.bfloat16), whh, preferred_element_type=jnp.float32)
            i_g = jax.nn.sigmoid(gates[:, 0 * Ep:1 * Ep])
            f_g = jax.nn.sigmoid(gates[:, 1 * Ep:2 * Ep])
            g_g = jnp.tanh(gates[:, 2 * Ep:3 * Ep])
            o_g = jax.nn.sigmoid(gates[:, 3 * Ep:4 * Ep])
            c_new = f_g * c + i_g * g_g
            h_new = o_g * jnp.tanh(c_new)
            if padded_time:
                keep = (t0 + t) < T_real        # freeze state past the real sequence end
                c_new = jnp.where(keep, c_new, c)
                h_new = jnp.where(keep, h_new, h)
            h_scr[...] = h_new
            c_scr[...] = c_new
            hseq_ref[t] = h_new.astype(hseq_ref.dtype)
            return carry

        # Capped unroll: keep MXU/EUP/VALU overlap without blowing the 64-vreg file.
        lax.fori_loop(0, Tt, step, 0, unroll=min(Tt, 4))

        @pl.when(pl.program_id(0) == pl.num_programs(0) - 1)
        def _():
            hT_ref[...] = h_scr[...]
            cT_ref[...] = c_scr[...]

    return pl.pallas_call(
        kernel,
        out_shape=(jax.ShapeDtypeStruct((Tp, Bp, Ep), jnp.bfloat16),
                   jax.ShapeDtypeStruct((Bp, Ep), jnp.float32),
                   jax.ShapeDtypeStruct((Bp, Ep), jnp.float32)),
        grid_spec=pltpu.PrefetchScalarGridSpec(
            num_scalar_prefetch=0,
            grid=(Tp // Tt,),
            in_specs=[
                pl.BlockSpec((Tt, Bp, G), lambda t: (t, 0, 0)),
                pl.BlockSpec(memory_space=pl.ANY),        # W_hh: raw HBM, copied once
                pl.BlockSpec((Bp, Ep), lambda t: (0, 0)),
                pl.BlockSpec((Bp, Ep), lambda t: (0, 0)),
            ],
            out_specs=(pl.BlockSpec((Tt, Bp, Ep), lambda t: (t, 0, 0)),
                       pl.BlockSpec((Bp, Ep), lambda t: (0, 0)),
                       pl.BlockSpec((Bp, Ep), lambda t: (0, 0))),
            scratch_shapes=[pltpu.VMEM((Ep, G), jnp.bfloat16),   # resident W_hh
                            pltpu.VMEM((Bp, Ep), jnp.float32),   # h carry
                            pltpu.VMEM((Bp, Ep), jnp.float32)],  # c carry
        ),
        compiler_params=pltpu.CompilerParams(
            dimension_semantics=("arbitrary",),
            vmem_limit_bytes=budget),
    )(gx_tm, whh_t, h0, c0)


# --------------------------------------------------------------------------- params
def init_raw_params(key, vocab_size, word_embed_size, num_layers=1, padding_idx=None):
    """Raw PyTorch-layout parameters (deterministic synthetic init)."""
    E = word_embed_size
    k = 1.0 / math.sqrt(E)
    keys = jax.random.split(key, 2 + 4 * num_layers + 2)
    embed = jax.random.normal(keys[0], (vocab_size, E), jnp.float32)
    if padding_idx is not None:
        embed = embed.at[padding_idx].set(0.0)
    layers = []
    ki = 1
    for _ in range(num_layers):
        w_ih = jax.random.uniform(keys[ki], (4 * E, E), jnp.float32, -k, k); ki += 1
        w_hh = jax.random.uniform(keys[ki], (4 * E, E), jnp.float32, -k, k); ki += 1
        b_ih = jax.random.uniform(keys[ki], (4 * E,), jnp.float32, -k, k); ki += 1
        b_hh = jax.random.uniform(keys[ki], (4 * E,), jnp.float32, -k, k); ki += 1
        layers.append(dict(w_ih=w_ih, w_hh=w_hh, b_ih=b_ih, b_hh=b_hh))
    w_out = jax.random.uniform(keys[ki], (vocab_size, E), jnp.float32, -k, k); ki += 1
    b_out = jax.random.uniform(keys[ki], (vocab_size,), jnp.float32, -k, k)
    return dict(embed=embed, layers=layers, w_out=w_out, b_out=b_out,
                vocab_size=vocab_size, word_embed_size=E, num_layers=num_layers)


def _pad_gate_weight(w, E, Ep):
    """(4E, E_in) PyTorch gate weight -> (Ep_in, 4*Ep) transposed, per-gate padded."""
    E_in = w.shape[1]
    w4 = w.reshape(4, E, E_in)                                   # (gate, out, in)
    w4 = jnp.pad(w4, ((0, 0), (0, Ep - E), (0, Ep - E_in)))
    return jnp.transpose(w4, (2, 0, 1)).reshape(Ep, 4 * Ep)      # (in, gate*out)


def _pad_gate_bias(b_ih, b_hh, E, Ep):
    b = (b_ih + b_hh).reshape(4, E)
    b = jnp.pad(b, ((0, 0), (0, Ep - E)))
    return b.reshape(1, 4 * Ep)


def prepare_kernel_params(raw, lane=128):
    """Pre-transpose, zero-pad to lane-aligned layouts, and store MXU inputs as bf16."""
    E = raw['word_embed_size']
    V = raw['vocab_size']
    Ep = _round_up(E, lane)
    Vp = _round_up(V, lane)
    layers = [dict(
        wih_t=_pad_gate_weight(lp['w_ih'], E, Ep).astype(jnp.bfloat16),
        whh_t=_pad_gate_weight(lp['w_hh'], E, Ep).astype(jnp.bfloat16),
        b=_pad_gate_bias(lp['b_ih'], lp['b_hh'], E, Ep))          # bias stays f32
        for lp in raw['layers']]
    return dict(
        embed=jnp.pad(raw['embed'], ((0, 0), (0, Ep - E))).astype(jnp.bfloat16),
        layers=layers,
        w_out_t=jnp.pad(raw['w_out'].T, ((0, Ep - E), (0, Vp - V))).astype(jnp.bfloat16),
        b_out=jnp.pad(raw['b_out'], (0, Vp - V)).reshape(1, Vp),
        E=E, Ep=Ep, V=V, Vp=Vp)


# --------------------------------------------------------------------------- forward
def word_lstm_forward(params, x, h0, c0):
    """Equivalent of WordLSTM.forward.

    x : (B, T) int32 token ids;  h0/c0 : (num_layers, B, E).
    Returns scores (B, T, vocab_size) and updated (hN, cN).
    """
    B, T = x.shape
    E, Ep, V, Vp = params['E'], params['Ep'], params['V'], params['Vp']
    Bp = _round_up(B, 8)
    budget = _vmem_budget_bytes()
    Tt = _choose_time_tile(T, Bp, Ep, budget)
    Tp = _round_up(T, Tt)        # pad time so the recurrent grid never degenerates to Tt=1

    # Embedding gather (data-dependent; plain-JAX glue), born time-major (T, B, Ep) bf16.
    emb = jnp.take(params['embed'], x.T, axis=0)                  # (T, B, Ep)
    x_tm = jnp.pad(emb, ((0, Tp - T), (0, Bp - B), (0, 0)))       # (Tp, Bp, Ep) bf16

    h0p = jnp.pad(h0.astype(jnp.float32), ((0, 0), (0, Bp - B), (0, Ep - E)))
    c0p = jnp.pad(c0.astype(jnp.float32), ((0, 0), (0, Bp - B), (0, Ep - E)))

    hT_list, cT_list = [], []
    for l, lp in enumerate(params['layers']):
        # Non-recurrent input projection for the whole sequence: one big bf16 MXU matmul,
        # gx written as bf16 (largest intermediate) to halve its HBM traffic.
        gx = matmul_bias(x_tm.reshape(Tp * Bp, Ep), lp['wih_t'], lp['b'],
                         out_dtype=jnp.bfloat16)
        gx = gx.reshape(Tp, Bp, 4 * Ep)
        # Serial recurrence, streamed over VMEM-budget-sized time chunks.
        x_tm, hT, cT = lstm_recurrent(gx, lp['whh_t'], h0p[l], c0p[l],
                                      T_real=T, time_tile=Tt)
        hT_list.append(hT[:B, :E])
        cT_list.append(cT[:B, :E])
    # NOTE: the PyTorch module builds nn.LSTM without dropout -> no dropout in forward.

    scores = matmul_bias(x_tm.reshape(Tp * Bp, Ep), params['w_out_t'],
                         params['b_out'], out_dtype=jnp.float32)
    scores = scores.reshape(Tp, Bp, Vp)[:T, :B, :V]
    # TODO(synk): fold this (T,B,V)->(B,T,V) layout change into the scores matmul's
    #             out_spec/index_map to save one HBM round-trip of the largest tensor.
    scores = jnp.transpose(scores, (1, 0, 2))
    return scores, (jnp.stack(hT_list), jnp.stack(cT_list))


# --------------------------------------------------------------------------- pure-JAX reference
def reference_forward(raw, x, h0, c0, *, emulate_bf16=False):
    """Pure-JAX reference.  With emulate_bf16=True it applies the same bf16 roundings the
    kernels use (bf16 matmul inputs, bf16 gx / hseq intermediates) so the comparison is
    tight; with False it is the exact f32 semantics of the PyTorch module."""
    r = ((lambda a: a.astype(jnp.bfloat16).astype(jnp.float32))
         if emulate_bf16 else (lambda a: a))
    emb = jnp.take(r(raw['embed']), x, axis=0)                    # (B, T, E)
    h_tm = jnp.transpose(emb, (1, 0, 2)).astype(jnp.float32)      # (T, B, E)
    hTs, cTs = [], []
    for l, lp in enumerate(raw['layers']):
        wih_t, whh_t = r(lp['w_ih'].T), r(lp['w_hh'].T)
        b = (lp['b_ih'] + lp['b_hh'])[None, :]
        gx_seq = r(jnp.einsum('tbe,ef->tbf', r(h_tm), wih_t) + b)

        def step(carry, gx_t, whh_t=whh_t):
            h, c = carry
            gates = gx_t + r(h) @ whh_t
            i, f, g, o = jnp.split(gates, 4, axis=-1)
            c = jax.nn.sigmoid(f) * c + jax.nn.sigmoid(i) * jnp.tanh(g)
            h = jax.nn.sigmoid(o) * jnp.tanh(c)
            return (h, c), h

        (hT, cT), h_tm = lax.scan(step, (h0[l], c0[l]), gx_seq)
        hTs.append(hT)
        cTs.append(cT)
    scores = r(h_tm) @ r(raw['w_out'].T) + raw['b_out'][None, :]
    return jnp.transpose(scores, (1, 0, 2)), (jnp.stack(hTs), jnp.stack(cTs))


# --------------------------------------------------------------------------- main
if __name__ == "__main__":
    vocab_size = 16
    word_embed_size = 32
    batch_size = 2
    seq_len = 8
    num_layers = 1          # module default

    key = jax.random.PRNGKey(0)
    pkey, xkey = jax.random.split(key)
    raw = init_raw_params(pkey, vocab_size, word_embed_size,
                          num_layers=num_layers, padding_idx=None)
    params = prepare_kernel_params(raw)

    x = jax.random.randint(xkey, (batch_size, seq_len), 0, vocab_size, jnp.int32)
    h0 = jnp.zeros((num_layers, batch_size, word_embed_size), jnp.float32)
    c0 = jnp.zeros((num_layers, batch_size, word_embed_size), jnp.float32)

    scores, (hN, cN) = word_lstm_forward(params, x, h0, c0)
    jax.block_until_ready(scores)
    jax.block_until_ready(hN)
    jax.block_until_ready(cN)

    # Numerics-matched reference (same bf16 matmul/intermediate rounding) -> tight check.
    ref_scores, (ref_h, ref_c) = reference_forward(raw, x, h0, c0, emulate_bf16=True)
    assert scores.shape == (batch_size, seq_len, vocab_size)
    assert jnp.allclose(scores, ref_scores, atol=2e-3, rtol=2e-3)
    assert jnp.allclose(hN, ref_h, atol=2e-3, rtol=2e-3)
    assert jnp.allclose(cN, ref_c, atol=2e-3, rtol=2e-3)

    # Full-f32 reference: coarse sanity bound on the bf16-MXU quantization error.
    f32_scores, (f32_h, f32_c) = reference_forward(raw, x, h0, c0, emulate_bf16=False)
    assert jnp.allclose(scores, f32_scores, atol=1e-1, rtol=1e-1)
    assert jnp.allclose(hN, f32_h, atol=1e-1, rtol=1e-1)
    assert jnp.allclose(cN, f32_c, atol=1e-1, rtol=1e-1)

    print("KERNEL_OK")
</pallas_src>

<mosaic_0001>
module attributes {stable_mosaic.version = 11 : i64} {
  func.func @_matmul_bias_kernel(%arg0: i32, %arg1: i32, %arg2: memref<64x128xbf16, #tpu.memory_space<vmem>>, %arg3: memref<128x512xbf16, #tpu.memory_space<vmem>>, %arg4: memref<1x512xf32, #tpu.memory_space<vmem>>, %arg5: memref<64x512xbf16, #tpu.memory_space<vmem>>) attributes {dimension_semantics = [#tpu.dimension_semantics<parallel>, #tpu.dimension_semantics<parallel>], iteration_bounds = array<i64: 1, 1>, scalar_prefetch = 0 : i64, scratch_operands = 0 : i64, tpu.core_type = #tpu.core_type<tc>, window_params = [{transform_indices = @transform_0, window_bounds = array<i64: 64, 128>}, {transform_indices = @transform_1, window_bounds = array<i64: 128, 512>}, {transform_indices = @transform_2, window_bounds = array<i64: 1, 512>}, {transform_indices = @transform_3, window_bounds = array<i64: 64, 512>}]} {
    %c0 = arith.constant 0 : index
    %c0_0 = arith.constant 0 : index
    %0 = vector.load %arg2[%c0, %c0_0] : memref<64x128xbf16, #tpu.memory_space<vmem>>, vector<64x128xbf16>
    %c0_1 = arith.constant 0 : index
    %c0_2 = arith.constant 0 : index
    %1 = vector.load %arg3[%c0_1, %c0_2] : memref<128x512xbf16, #tpu.memory_space<vmem>>, vector<128x512xbf16>
    %cst = arith.constant dense<0.000000e+00> : vector<64x512xf32>
    %2 = tpu.matmul %0, %1, %cst {dimension_numbers = #tpu.dot_dimension_numbers<[1], [0], [0], [1], [0, 0, 1, 1], [], []>} : vector<64x128xbf16>, vector<128x512xbf16>, vector<64x512xf32> -> vector<64x512xf32>
    %c0_3 = arith.constant 0 : index
    %c0_4 = arith.constant 0 : index
    %3 = vector.load %arg4[%c0_3, %c0_4] : memref<1x512xf32, #tpu.memory_space<vmem>>, vector<1x512xf32>
    %4 = vector.broadcast %3 : vector<1x512xf32> to vector<64x512xf32>
    %5 = arith.addf %2, %4 : vector<64x512xf32>
    %6 = arith.truncf %5 : vector<64x512xf32> to vector<64x512xbf16>
    %c0_5 = arith.constant 0 : index
    %c0_6 = arith.constant 0 : index
    %7 = vector.load %arg5[%c0_5, %c0_6] : memref<64x512xbf16, #tpu.memory_space<vmem>>, vector<64x512xbf16>
    tpu.vector_store %arg5[%c0_5, %c0_6], %6 {strides = array<i32>} : memref<64x512xbf16, #tpu.memory_space<vmem>>, vector<64x512xbf16>,
    return
  }
  func.func @transform_0(%arg0: i32, %arg1: i32) -> (i32, i32) {
    %c0_i32 = arith.constant 0 : i32
    %c0_i32_0 = arith.constant 0 : i32
    return %arg0, %c0_i32 : i32, i32
  }
  func.func @transform_1(%arg0: i32, %arg1: i32) -> (i32, i32) {
    %c0_i32 = arith.constant 0 : i32
    %c0_i32_0 = arith.constant 0 : i32
    return %c0_i32, %arg1 : i32, i32
  }
  func.func @transform_2(%arg0: i32, %arg1: i32) -> (i32, i32) {
    %c0_i32 = arith.constant 0 : i32
    %c0_i32_0 = arith.constant 0 : i32
    return %c0_i32, %arg1 : i32, i32
  }
  func.func @transform_3(%arg0: i32, %arg1: i32) -> (i32, i32) {
    %c0_i32 = arith.constant 0 : i32
    return %arg0, %arg1 : i32, i32
  }
}

</mosaic_0001>

<llo_original>
// kernel: tpu_custom_call.1
$region0: #{tpu_custom_call.1}
  #allocation0 [shape = 'u32[]', space=smem, size = 0x4, offset = 0x4, fixed_abs, tag = 'smem constant byte address 0x4 - core index']
  #allocation1 [shape = 'u32[144,128]{1,0:T(1,128)}', space=vmem, size = 0x12000, scoped, tag = 'internal scratch']
  %s0 = inlined_call_operand.hbm [shape: bf16[64,128], index: 0, kind: input, shape index: {}]
  %s1 = inlined_call_operand.hbm [shape: bf16[128,512], index: 1, kind: input, shape index: {}]
  %s2 = inlined_call_operand.vmem [shape: f32[1,512], index: 2, kind: input, shape index: {}]
  %s3 = inlined_call_operand.hbm [shape: bf16[64,512], index: 3, kind: output, shape index: {}]
  %s4 = sld [smem:[#allocation0]]
  $region30: #{tpu_custom_call.1} parent=0
    _
  %s6 = ssub.s32 1, %s4
  %s7 = scalar_select 0, %s6, %s4
  $region1: #{tpu_custom_call.1} parent=0
    #allocation2 [shape = 'u8[16384]{0}', space=vmem, size = 0x4000, scoped, tag = 'input window, operand 0, single buffered']
    #allocation3 [shape = 's32[1]{0}', space=sflag, size = 0x4, scoped, tag = 'scoped memory for tpu_custom_call.1']
    #allocation4 [shape = 's32[1]{0}', space=sflag, size = 0x4, scoped, tag = 'scoped memory for tpu_custom_call.1']
    #allocation5 [shape = 'u8[131072]{0}', space=vmem, size = 0x20000, scoped, tag = 'input window, operand 1, single buffered']
    #allocation6 [shape = 's32[1]{0}', space=sflag, size = 0x4, scoped, tag = 'scoped memory for tpu_custom_call.1']
    #allocation7 [shape = 'u8[65536]{0}', space=vmem, size = 0x10000, scoped, tag = 'output window, operand 0, single buffered']
    %8 = vsyncpa [#allocation3], 0
    %9 = vsyncpa [#allocation6], 0
    %10 = vsyncpa [#allocation4], 0
    // Predicated region
    $region2: #{tpu_custom_call.1} parent=1 // pred_check
      _
    $region3: #{tpu_custom_call.1} parent=1 // pred_check_branch
      %12 = sbr.rel (0) target = $region5
    $region4: #{tpu_custom_call.1} parent=1 // pred_region
      %s14 = ssub.s32 512, 512
      %15 = vsyncadd [#allocation3], %s14
      %s16 = sshll.u32 [#allocation2], 4
      %s17 = int_to_ptr.vmem [resolvable:$true] %s16
      %22 = dma.hbm_to_vmem [thread:$0]  %s0, 512, %s17, [#allocation3], 64, 64, 4
    $region5: #{tpu_custom_call.1} parent=1 // pred_fallthru
      _
    // Predicated region
    $region6: #{tpu_custom_call.1} parent=1 // pred_check
      _
    $region7: #{tpu_custom_call.1} parent=1 // pred_check_branch
      %24 = sbr.rel (0) target = $region9
    $region8: #{tpu_custom_call.1} parent=1 // pred_region
      %s26 = ssub.s32 4096, 4096
      %27 = vsyncadd [#allocation6], %s26
      %s28 = sshll.u32 [#allocation5], 4
      %s29 = int_to_ptr.vmem [resolvable:$true] %s28
      %34 = dma.hbm_to_vmem [thread:$0]  %s1, 4096, %s29, [#allocation6], 256, 256, 16
    $region9: #{tpu_custom_call.1} parent=1 // pred_fallthru
      _
    // Predicated region
    $region10: #{tpu_custom_call.1} parent=1 // pred_check
      _
    $region11: #{tpu_custom_call.1} parent=1 // pred_check_branch
      %36 = sbr.rel (0) target = $region13
    $region12: #{tpu_custom_call.1} parent=1 // pred_region
      _
    $region13: #{tpu_custom_call.1} parent=1 // pred_fallthru
      _
    // Predicated region
    $region14: #{tpu_custom_call.1} parent=1 // pred_check
      _
    $region15: #{tpu_custom_call.1} parent=1 // pred_check_branch
      %38 = sbr.rel (0) target = $region17
    $region16: #{tpu_custom_call.1} parent=1 // pred_region
      %39 = dma.done [#allocation3], 512
    $region17: #{tpu_custom_call.1} parent=1 // pred_fallthru
      _
    // Predicated region
    $region18: #{tpu_custom_call.1} parent=1 // pred_check
      _
    $region19: #{tpu_custom_call.1} parent=1 // pred_check_branch
      %41 = sbr.rel (0) target = $region21
    $region20: #{tpu_custom_call.1} parent=1 // pred_region
      %42 = dma.done [#allocation6], 4096
    $region21: #{tpu_custom_call.1} parent=1 // pred_fallthru
      _
    %v44 = vld [vmem:[#allocation2] sm:$0xf]
    %v45 = vld [vmem:[#allocation2 + $0x4] sm:$0xf]
    %v46 = vld [vmem:[#allocation2 + $0x8] sm:$0xf]
    %v47 = vld [vmem:[#allocation2 + $0xc] sm:$0xf]
    %v48 = vld [vmem:[#allocation2 + $0x10] sm:$0xf]
    %v49 = vld [vmem:[#allocation2 + $0x14] sm:$0xf]
    %v50 = vld [vmem:[#allocation2 + $0x18] sm:$0xf]
    %v51 = vld [vmem:[#allocation2 + $0x1c] sm:$0xf]
    %v52 = vld [vmem:[#allocation5] sm:$0xff]
    %v53 = vld [vmem:[#allocation5 + $0x8] sm:$0xff]
    %v54 = vld [vmem:[#allocation5 + $0x10] sm:$0xff]
    %v55 = vld [vmem:[#allocation5 + $0x18] sm:$0xff]
    %v56 = vld [vmem:[#allocation5 + $0x20] sm:$0xff]
    %v57 = vld [vmem:[#allocation5 + $0x28] sm:$0xff]
    %v58 = vld [vmem:[#allocation5 + $0x30] sm:$0xff]
    %v59 = vld [vmem:[#allocation5 + $0x38] sm:$0xff]
    %v60 = vld [vmem:[#allocation5 + $0x40] sm:$0xff]
    %v61 = vld [vmem:[#allocation5 + $0x48] sm:$0xff]
    %v62 = vld [vmem:[#allocation5 + $0x50] sm:$0xff]
    %v63 = vld [vmem:[#allocation5 + $0x58] sm:$0xff]
    %v64 = vld [vmem:[#allocation5 + $0x60] sm:$0xff]
    %v65 = vld [vmem:[#allocation5 + $0x68] sm:$0xff]
    %v66 = vld [vmem:[#allocation5 + $0x70] sm:$0xff]
    %v67 = vld [vmem:[#allocation5 + $0x78] sm:$0xff]
    %v68 = vld [vmem:[#allocation5 + $0x80] sm:$0xff]
    %v69 = vld [vmem:[#allocation5 + $0x88] sm:$0xff]
    %v70 = vld [vmem:[#allocation5 + $0x90] sm:$0xff]
    %v71 = vld [vmem:[#allocation5 + $0x98] sm:$0xff]
    %v72 = vld [vmem:[#allocation5 + $0xa0] sm:$0xff]
    %v73 = vld [vmem:[#allocation5 + $0xa8] sm:$0xff]
    %v74 = vld [vmem:[#allocation5 + $0xb0] sm:$0xff]
    %v75 = vld [vmem:[#allocation5 + $0xb8] sm:$0xff]
    %v76 = vld [vmem:[#allocation5 + $0xc0] sm:$0xff]
    %v77 = vld [vmem:[#allocation5 + $0xc8] sm:$0xff]
    %v78 = vld [vmem:[#allocation5 + $0xd0] sm:$0xff]
    %v79 = vld [vmem:[#allocation5 + $0xd8] sm:$0xff]
    %v80 = vld [vmem:[#allocation5 + $0xe0] sm:$0xff]
    %v81 = vld [vmem:[#allocation5 + $0xe8] sm:$0xff]
    %v82 = vld [vmem:[#allocation5 + $0xf0] sm:$0xff]
    %v83 = vld [vmem:[#allocation5 + $0xf8] sm:$0xff]
    %v84 = vld [vmem:[%s2] sm:$0xf]
    %v86 = vlaneseq
    %v87 = vshrl.u32 %v86, 7
    %v88 = vsub.s32 0, %v87
    %v89 = vrot.slane %v84, %v88
    %v90 = vlaneseq
    %v91 = vshrl.u32 %v90, 7
    %v92 = vsub.s32 1, %v91
    %v93 = vrot.slane %v84, %v92
    %v94 = vlaneseq
    %v95 = vshrl.u32 %v94, 7
    %v96 = vsub.s32 2, %v95
    %v97 = vrot.slane %v84, %v96
    %v98 = vlaneseq
    %v99 = vshrl.u32 %v98, 7
    %v100 = vsub.s32 3, %v99
    %v101 = vrot.slane %v84, %v100
    %v114 = vunpack.c.l.b16 %v44
    %v115 = vunpack.c.l.b16 %v45
    %v116 = vunpack.c.l.b16 %v46
    %v117 = vunpack.c.l.b16 %v47
    %v118 = vunpack.c.l.b16 %v48
    %v119 = vunpack.c.l.b16 %v49
    %v120 = vunpack.c.l.b16 %v50
    %v121 = vunpack.c.l.b16 %v51
    %v122 = vpack.c.b16 %v115, %v114
    %v123 = vpack.c.b16 %v117, %v116
    %v124 = vpack.c.b16 %v119, %v118
    %v125 = vpack.c.b16 %v121, %v120
    %v162 = vunpack.c.l.b16 %v52
    %v163 = vunpack.c.h.b16 %v52
    %v164 = vunpack.c.l.b16 %v53
    %v165 = vunpack.c.h.b16 %v53
    %v166 = vunpack.c.l.b16 %v54
    %v167 = vunpack.c.h.b16 %v54
    %v168 = vunpack.c.l.b16 %v55
    %v169 = vunpack.c.h.b16 %v55
    %v170 = vunpack.c.l.b16 %v56
    %v171 = vunpack.c.h.b16 %v56
    %v172 = vunpack.c.l.b16 %v57
    %v173 = vunpack.c.h.b16 %v57
    %v174 = vunpack.c.l.b16 %v58
    %v175 = vunpack.c.h.b16 %v58
    %v176 = vunpack.c.l.b16 %v59
    %v177 = vunpack.c.h.b16 %v59
    %v178 = vunpack.c.l.b16 %v60
    %v179 = vunpack.c.h.b16 %v60
    %v180 = vunpack.c.l.b16 %v61
    %v181 = vunpack.c.h.b16 %v61
    %v182 = vunpack.c.l.b16 %v62
    %v183 = vunpack.c.h.b16 %v62
    %v184 = vunpack.c.l.b16 %v63
    %v185 = vunpack.c.h.b16 %v63
    %v186 = vunpack.c.l.b16 %v64
    %v187 = vunpack.c.h.b16 %v64
    %v188 = vunpack.c.l.b16 %v65
    %v189 = vunpack.c.h.b16 %v65
    %v190 = vunpack.c.l.b16 %v66
    %v191 = vunpack.c.h.b16 %v66
    %v192 = vunpack.c.l.b16 %v67
    %v193 = vunpack.c.h.b16 %v67
    %v194 = vunpack.c.l.b16 %v68
    %v195 = vunpack.c.h.b16 %v68
    %v196 = vunpack.c.l.b16 %v69
    %v197 = vunpack.c.h.b16 %v69
    %v198 = vunpack.c.l.b16 %v70
    %v199 = vunpack.c.h.b16 %v70
    %v200 = vunpack.c.l.b16 %v71
    %v201 = vunpack.c.h.b16 %v71
    %v202 = vunpack.c.l.b16 %v72
    %v203 = vunpack.c.h.b16 %v72
    %v204 = vunpack.c.l.b16 %v73
    %v205 = vunpack.c.h.b16 %v73
    %v206 = vunpack.c.l.b16 %v74
    %v207 = vunpack.c.h.b16 %v74
    %v208 = vunpack.c.l.b16 %v75
    %v209 = vunpack.c.h.b16 %v75
    %v210 = vunpack.c.l.b16 %v76
    %v211 = vunpack.c.h.b16 %v76
    %v212 = vunpack.c.l.b16 %v77
    %v213 = vunpack.c.h.b16 %v77
    %v214 = vunpack.c.l.b16 %v78
    %v215 = vunpack.c.h.b16 %v78
    %v216 = vunpack.c.l.b16 %v79
    %v217 = vunpack.c.h.b16 %v79
    %v218 = vunpack.c.l.b16 %v80
    %v219 = vunpack.c.h.b16 %v80
    %v220 = vunpack.c.l.b16 %v81
    %v221 = vunpack.c.h.b16 %v81
    %v222 = vunpack.c.l.b16 %v82
    %v223 = vunpack.c.h.b16 %v82
    %v224 = vunpack.c.l.b16 %v83
    %v225 = vunpack.c.h.b16 %v83
    %v226 = vpack.c.b16 %v166, %v162
    %v227 = vpack.c.b16 %v167, %v163
    %v228 = vpack.c.b16 %v168, %v164
    %v229 = vpack.c.b16 %v169, %v165
    %v230 = vpack.c.b16 %v174, %v170
    %v231 = vpack.c.b16 %v175, %v171
    %v232 = vpack.c.b16 %v176, %v172
    %v233 = vpack.c.b16 %v177, %v173
    %v234 = vpack.c.b16 %v182, %v178
    %v235 = vpack.c.b16 %v183, %v179
    %v236 = vpack.c.b16 %v184, %v180
    %v237 = vpack.c.b16 %v185, %v181
    %v238 = vpack.c.b16 %v190, %v186
    %v239 = vpack.c.b16 %v191, %v187
    %v240 = vpack.c.b16 %v192, %v188
    %v241 = vpack.c.b16 %v193, %v189
    %v242 = vpack.c.b16 %v198, %v194
    %v243 = vpack.c.b16 %v199, %v195
    %v244 = vpack.c.b16 %v200, %v196
    %v245 = vpack.c.b16 %v201, %v197
    %v246 = vpack.c.b16 %v206, %v202
    %v247 = vpack.c.b16 %v207, %v203
    %v248 = vpack.c.b16 %v208, %v204
    %v249 = vpack.c.b16 %v209, %v205
    %v250 = vpack.c.b16 %v214, %v210
    %v251 = vpack.c.b16 %v215, %v211
    %v252 = vpack.c.b16 %v216, %v212
    %v253 = vpack.c.b16 %v217, %v213
    %v254 = vpack.c.b16 %v222, %v218
    %v255 = vpack.c.b16 %v223, %v219
    %v256 = vpack.c.b16 %v224, %v220
    %v257 = vpack.c.b16 %v225, %v221
    %290 = vmatprep.subr.bf16.mxu0 %v227
    %291 = vmatpush1.bf16.msra.mxu0 %v226
    %292 = vmatprep.subr.bf16.mxu0 %v231
    %293 = vmatpush1.bf16.msra.mxu0 %v230
    %294 = vmatprep.subr.bf16.mxu0 %v235
    %295 = vmatpush1.bf16.msra.mxu0 %v234
    %296 = vmatprep.subr.bf16.mxu0 %v239
    %297 = vmatpush1.bf16.msra.mxu0 %v238
    %298 = vmatprep.subr.bf16.mxu0 %v243
    %299 = vmatpush1.bf16.msra.mxu0 %v242
    %300 = vmatprep.subr.bf16.mxu0 %v247
    %301 = vmatpush1.bf16.msra.mxu0 %v246
    %302 = vmatprep.subr.bf16.mxu0 %v251
    %303 = vmatpush1.bf16.msra.mxu0 %v250
    %304 = vmatprep.subr.bf16.mxu0 %v255
    %305 = vmatpush1.bf16.msra.mxu0 %v254
    %306 = vmatprep.subr.bf16.mxu0 0
    %307 = vmatpush1.bf16.msra.mxu0 0
    %308 = vmatprep.subr.bf16.mxu0 0
    %309 = vmatpush1.bf16.msra.mxu0 0
    %310 = vmatprep.subr.bf16.mxu0 0
    %311 = vmatpush1.bf16.msra.mxu0 0
    %312 = vmatprep.subr.bf16.mxu0 0
    %313 = vmatpush1.bf16.msra.mxu0 0
    %314 = vmatprep.subr.bf16.mxu0 0
    %315 = vmatpush1.bf16.msra.mxu0 0
    %316 = vmatprep.subr.bf16.mxu0 0
    %317 = vmatpush1.bf16.msra.mxu0 0
    %318 = vmatprep.subr.bf16.mxu0 0
    %319 = vmatpush1.bf16.msra.mxu0 0
    %320 = vmatprep.subr.bf16.mxu0 0
    %321 = vmatpush1.bf16.msra.mxu0 0
    %322 = vmatprep.mubr.bf16.mxu0 0
    %323 = vmatmul.mubr.bf16.gmra.mrb[0].mxu0 %v122
    %v324 = vpop.f32.mrb[0].mxu0
    %v325 = vadd.f32 %v89, %v324
    %v326 = vpop.f32.mrb[0].mxu0
    %v327 = vadd.f32 %v93, %v326
    %v328 = vpop.f32.mrb[0].mxu0
    %v329 = vadd.f32 %v89, %v328
    %v330 = vpop.f32.mrb[0].mxu0
    %v331 = vadd.f32 %v93, %v330
    %332 = vmatprep.mubr.bf16.mxu0 0
    %333 = vmatmul.mubr.bf16.gmra.mrb[0].mxu0 %v123
    %v334 = vpop.f32.mrb[0].mxu0
    %v335 = vadd.f32 %v89, %v334
    %v336 = vpop.f32.mrb[0].mxu0
    %v337 = vadd.f32 %v93, %v336
    %v338 = vpop.f32.mrb[0].mxu0
    %v339 = vadd.f32 %v89, %v338
    %v340 = vpop.f32.mrb[0].mxu0
    %v341 = vadd.f32 %v93, %v340
    %342 = vmatprep.mubr.bf16.mxu0 0
    %343 = vmatmul.mubr.bf16.gmra.mrb[0].mxu0 %v124
    %v344 = vpop.f32.mrb[0].mxu0
    %v345 = vadd.f32 %v89, %v344
    %v346 = vpop.f32.mrb[0].mxu0
    %v347 = vadd.f32 %v93, %v346
    %v348 = vpop.f32.mrb[0].mxu0
    %v349 = vadd.f32 %v89, %v348
    %v350 = vpop.f32.mrb[0].mxu0
    %v351 = vadd.f32 %v93, %v350
    %352 = vmatprep.mubr.bf16.mxu0 0
    %353 = vmatmul.mubr.bf16.gmra.mrb[0].mxu0 %v125
    %v354 = vpop.f32.mrb[0].mxu0
    %v355 = vadd.f32 %v89, %v354
    %v356 = vpop.f32.mrb[0].mxu0
    %v357 = vadd.f32 %v93, %v356
    %v358 = vpop.f32.mrb[0].mxu0
    %v359 = vadd.f32 %v89, %v358
    %v360 = vpop.f32.mrb[0].mxu0
    %v361 = vadd.f32 %v93, %v360
    %362 = vdwg.mxu0
    %363 = vmatprep.subr.bf16.mxu0 %v229
    %364 = vmatpush1.bf16.msra.mxu0 %v228
    %365 = vmatprep.subr.bf16.mxu0 %v233
    %366 = vmatpush1.bf16.msra.mxu0 %v232
    %367 = vmatprep.subr.bf16.mxu0 %v237
    %368 = vmatpush1.bf16.msra.mxu0 %v236
    %369 = vmatprep.subr.bf16.mxu0 %v241
    %370 = vmatpush1.bf16.msra.mxu0 %v240
    %371 = vmatprep.subr.bf16.mxu0 %v245
    %372 = vmatpush1.bf16.msra.mxu0 %v244
    %373 = vmatprep.subr.bf16.mxu0 %v249
    %374 = vmatpush1.bf16.msra.mxu0 %v248
    %375 = vmatprep.subr.bf16.mxu0 %v253
    %376 = vmatpush1.bf16.msra.mxu0 %v252
    %377 = vmatprep.subr.bf16.mxu0 %v257
    %378 = vmatpush1.bf16.msra.mxu0 %v256
    %379 = vmatprep.subr.bf16.mxu0 0
    %380 = vmatpush1.bf16.msra.mxu0 0
    %381 = vmatprep.subr.bf16.mxu0 0
    %382 = vmatpush1.bf16.msra.mxu0 0
    %383 = vmatprep.subr.bf16.mxu0 0
    %384 = vmatpush1.bf16.msra.mxu0 0
    %385 = vmatprep.subr.bf16.mxu0 0
    %386 = vmatpush1.bf16.msra.mxu0 0
    %387 = vmatprep.subr.bf16.mxu0 0
    %388 = vmatpush1.bf16.msra.mxu0 0
    %389 = vmatprep.subr.bf16.mxu0 0
    %390 = vmatpush1.bf16.msra.mxu0 0
    %391 = vmatprep.subr.bf16.mxu0 0
    %392 = vmatpush1.bf16.msra.mxu0 0
    %393 = vmatprep.subr.bf16.mxu0 0
    %394 = vmatpush1.bf16.msra.mxu0 0
    %395 = vmatprep.mubr.bf16.mxu0 0
    %396 = vmatmul.mubr.bf16.gmra.mrb[0].mxu0 %v122
    %v397 = vpop.f32.mrb[0].mxu0
    %v398 = vadd.f32 %v97, %v397
    %v399 = vpop.f32.mrb[0].mxu0
    %v400 = vadd.f32 %v101, %v399
    %v401 = vpop.f32.mrb[0].mxu0
    %v402 = vadd.f32 %v97, %v401
    %v403 = vpop.f32.mrb[0].mxu0
    %v404 = vadd.f32 %v101, %v403
    %405 = vmatprep.mubr.bf16.mxu0 0
    %406 = vmatmul.mubr.bf16.gmra.mrb[0].mxu0 %v123
    %v407 = vpop.f32.mrb[0].mxu0
    %v408 = vadd.f32 %v97, %v407
    %v409 = vpop.f32.mrb[0].mxu0
    %v410 = vadd.f32 %v101, %v409
    %v411 = vpop.f32.mrb[0].mxu0
    %v412 = vadd.f32 %v97, %v411
    %v413 = vpop.f32.mrb[0].mxu0
    %v414 = vadd.f32 %v101, %v413
    %415 = vmatprep.mubr.bf16.mxu0 0
    %416 = vmatmul.mubr.bf16.gmra.mrb[0].mxu0 %v124
    %v417 = vpop.f32.mrb[0].mxu0
    %v418 = vadd.f32 %v97, %v417
    %v419 = vpop.f32.mrb[0].mxu0
    %v420 = vadd.f32 %v101, %v419
    %v421 = vpop.f32.mrb[0].mxu0
    %v422 = vadd.f32 %v97, %v421
    %v423 = vpop.f32.mrb[0].mxu0
    %v424 = vadd.f32 %v101, %v423
    %425 = vmatprep.mubr.bf16.mxu0 0
    %426 = vmatmul.mubr.bf16.gmra.mrb[0].mxu0 %v125
    %v427 = vpop.f32.mrb[0].mxu0
    %v428 = vadd.f32 %v97, %v427
    %v429 = vpop.f32.mrb[0].mxu0
    %v430 = vadd.f32 %v101, %v429
    %v431 = vpop.f32.mrb[0].mxu0
    %v432 = vadd.f32 %v97, %v431
    %v433 = vpop.f32.mrb[0].mxu0
    %v434 = vadd.f32 %v101, %v433
    %435 = vdwg.mxu0
    %v436 = vpack.c.bf16 %v329, %v325
    %v437 = vpack.c.bf16 %v331, %v327
    %v438 = vpack.c.bf16 %v402, %v398
    %v439 = vpack.c.bf16 %v404, %v400
    %v440 = vpack.c.bf16 %v339, %v335
    %v441 = vpack.c.bf16 %v341, %v337
    %v442 = vpack.c.bf16 %v412, %v408
    %v443 = vpack.c.bf16 %v414, %v410
    %v444 = vpack.c.bf16 %v349, %v345
    %v445 = vpack.c.bf16 %v351, %v347
    %v446 = vpack.c.bf16 %v422, %v418
    %v447 = vpack.c.bf16 %v424, %v420
    %v448 = vpack.c.bf16 %v359, %v355
    %v449 = vpack.c.bf16 %v361, %v357
    %v450 = vpack.c.bf16 %v432, %v428
    %v451 = vpack.c.bf16 %v434, %v430
    %v468 = vunpack.c.l.b16 %v436
    %v469 = vunpack.c.l.b16 %v437
    %v470 = vunpack.c.l.b16 %v438
    %v471 = vunpack.c.l.b16 %v439
    %v472 = vunpack.c.h.b16 %v436
    %v473 = vunpack.c.h.b16 %v437
    %v474 = vunpack.c.h.b16 %v438
    %v475 = vunpack.c.h.b16 %v439
    %v476 = vunpack.c.l.b16 %v440
    %v477 = vunpack.c.l.b16 %v441
    %v478 = vunpack.c.l.b16 %v442
    %v479 = vunpack.c.l.b16 %v443
    %v480 = vunpack.c.h.b16 %v440
    %v481 = vunpack.c.h.b16 %v441
    %v482 = vunpack.c.h.b16 %v442
    %v483 = vunpack.c.h.b16 %v443
    %v484 = vunpack.c.l.b16 %v444
    %v485 = vunpack.c.l.b16 %v445
    %v486 = vunpack.c.l.b16 %v446
    %v487 = vunpack.c.l.b16 %v447
    %v488 = vunpack.c.h.b16 %v444
    %v489 = vunpack.c.h.b16 %v445
    %v490 = vunpack.c.h.b16 %v446
    %v491 = vunpack.c.h.b16 %v447
    %v492 = vunpack.c.l.b16 %v448
    %v493 = vunpack.c.l.b16 %v449
    %v494 = vunpack.c.l.b16 %v450
    %v495 = vunpack.c.l.b16 %v451
    %v496 = vunpack.c.h.b16 %v448
    %v497 = vunpack.c.h.b16 %v449
    %v498 = vunpack.c.h.b16 %v450
    %v499 = vunpack.c.h.b16 %v451
    %v500 = vpack.c.b16 %v469, %v468
    %v501 = vpack.c.b16 %v471, %v470
    %v502 = vpack.c.b16 %v473, %v472
    %v503 = vpack.c.b16 %v475, %v474
    %v504 = vpack.c.b16 %v477, %v476
    %v505 = vpack.c.b16 %v479, %v478
    %v506 = vpack.c.b16 %v481, %v480
    %v507 = vpack.c.b16 %v483, %v482
    %v508 = vpack.c.b16 %v485, %v484
    %v509 = vpack.c.b16 %v487, %v486
    %v510 = vpack.c.b16 %v489, %v488
    %v511 = vpack.c.b16 %v491, %v490
    %v512 = vpack.c.b16 %v493, %v492
    %v513 = vpack.c.b16 %v495, %v494
    %v514 = vpack.c.b16 %v497, %v496
    %v515 = vpack.c.b16 %v499, %v498
    %532 = vst [vmem:[#allocation7] sm:$0xff] %v500
    %533 = vst [vmem:[#allocation7 + $0x8] sm:$0xff] %v501
    %534 = vst [vmem:[#allocation7 + $0x10] sm:$0xff] %v502
    %535 = vst [vmem:[#allocation7 + $0x18] sm:$0xff] %v503
    %536 = vst [vmem:[#allocation7 + $0x20] sm:$0xff] %v504
    %537 = vst [vmem:[#allocation7 + $0x28] sm:$0xff] %v505
    %538 = vst [vmem:[#allocation7 + $0x30] sm:$0xff] %v506
    %539 = vst [vmem:[#allocation7 + $0x38] sm:$0xff] %v507
    %540 = vst [vmem:[#allocation7 + $0x40] sm:$0xff] %v508
    %541 = vst [vmem:[#allocation7 + $0x48] sm:$0xff] %v509
    %542 = vst [vmem:[#allocation7 + $0x50] sm:$0xff] %v510
    %543 = vst [vmem:[#allocation7 + $0x58] sm:$0xff] %v511
    %544 = vst [vmem:[#allocation7 + $0x60] sm:$0xff] %v512
    %545 = vst [vmem:[#allocation7 + $0x68] sm:$0xff] %v513
    %546 = vst [vmem:[#allocation7 + $0x70] sm:$0xff] %v514
    %547 = vst [vmem:[#allocation7 + $0x78] sm:$0xff] %v515
    // Predicated region
    $region22: #{tpu_custom_call.1} parent=1 // pred_check
      _
    $region23: #{tpu_custom_call.1} parent=1 // pred_check_branch
      %549 = sbr.rel (0) target = $region25
    $region24: #{tpu_custom_call.1} parent=1 // pred_region
      %s551 = ssub.s32 2048, 2048
      %552 = vsyncadd [#allocation4], %s551
      %s553 = sshll.u32 [#allocation7], 4
      %s554 = int_to_ptr.vmem [resolvable:$true] %s553
      %559 = dma.vmem_to_hbm [thread:$0]  %s554, 2048, %s3, [#allocation4], 256, 256, 16
    $region25: #{tpu_custom_call.1} parent=1 // pred_fallthru
      _
    // Predicated region
    $region26: #{tpu_custom_call.1} parent=1 // pred_check
      _
    $region27: #{tpu_custom_call.1} parent=1 // pred_check_branch
      %561 = sbr.rel (0) target = $region29
    $region28: #{tpu_custom_call.1} parent=1 // pred_region
      %562 = dma.done [#allocation4], 2048
    $region29: #{tpu_custom_call.1} parent=1 // pred_fallthru
      _
    %563 = vsyncpa [#allocation3], 1
    %564 = vsyncpa [#allocation6], 1
    %565 = vsyncpa [#allocation4], 1

</llo_original>
